<compile_context>
chip_gen: v5e
topology: v5e:2x2
jax: 0.10.0
libtpu: 0.0.40
codegen_flags: <defaults>
</compile_context>

<pallas_src>
import jax
import jax.numpy as jnp
from jax import lax
from jax.experimental import pallas as pl
from jax.experimental.pallas import tpu as pltpu


def _pick_node_tile(n_nodes: int) -> int:
    """Largest lane-aligned tile of the node axis (multiple of 128 dividing N), else full N."""
    if n_nodes % 128 == 0:
        for cand in (512, 384, 256, 128):
            if cand <= n_nodes and n_nodes % cand == 0:
                return cand
    return n_nodes


def _make_output_layer_kernel(*, c_in, c_out, t_in, t_out, kt, rows,
                              residual_mode, pad_lo=0, pad_hi=0):
    """Builds the fused kernel body for a static configuration."""

    def kernel(x_ref, w_ref, b_ref, wfc_ref, bfc_ref, out_ref):
        f32 = jnp.float32
        n_t = x_ref.shape[-1]                       # node-tile width (lane dim)

        # 1x1-conv accumulators: one (t_out, n_t) slab per output channel, seeded with bias.
        accs = [jnp.zeros((t_out, n_t), f32) + bfc_ref[oc] for oc in range(c_out)]

        # Static loop over the temporal-conv "height" axis (= the c_in feature axis).
        for h in range(c_in):
            acc = jnp.zeros((rows, n_t), f32)
            for dh in range(kt):
                j = h + dh - 1                      # Conv2d padding = (1, 0) on this axis
                if 0 <= j < c_in:
                    x_slab = x_ref[0, j, :, :]      # (t_in, n_t): time x nodes
                    acc = acc + jnp.dot(w_ref[dh, :, :], x_slab,
                                        preferred_element_type=f32)
            acc = acc + b_ref[...]                  # (rows, 1) broadcast over lanes

            p = acc[:t_out, :]                      # conv1 first  t_out channels
            q = acc[t_out:2 * t_out, :]             # conv1 last   t_out channels
            if residual_mode == "conv":
                r = acc[2 * t_out:, :]              # conv_reshape channels
            elif residual_mode == "identity":
                r = x_ref[0, h, :, :]               # identity residual (t_in == t_out)
            else:                                   # "pad": zero-pad (crop if hi < 0) along time
                x_slab = x_ref[0, h, :, :]
                body = x_slab if pad_hi >= 0 else x_slab[:t_in + pad_hi, :]
                pieces = []
                if pad_lo > 0:
                    pieces.append(jnp.zeros((pad_lo, n_t), f32))
                pieces.append(body)
                if pad_hi > 0:
                    pieces.append(jnp.zeros((pad_hi, n_t), f32))
                r = pieces[0] if len(pieces) == 1 else jnp.concatenate(pieces, axis=0)

            gate = 1.0 / (1.0 + jnp.exp(-q))        # sigmoid (EUP)
            g = (p + r) * gate                      # GLU output slab, (t_out, n_t)

            # fc (1x1 conv over the c_in axis): out[oc] += Wfc[oc, h] * g   (SMEM scalars)
            for oc in range(c_out):
                accs[oc] = accs[oc] + wfc_ref[oc, h] * g

        for oc in range(c_out):
            out_ref[0, oc, :, :] = accs[oc].astype(out_ref.dtype)

    return kernel


def output_layer_forward(X, params, *, n_timesteps_in, n_timesteps_out, kt=3):
    """Fused Pallas forward pass of OutputLayer.

    X:      (B, c_in, T, N) float32, with T >= n_timesteps_in
    params: w1  (2*T_out, T_in, kt), b1 (2*T_out,)   -- TemporalConvLayer.conv1
            wr  (T_out, T_in, kt),   br (T_out,)     -- TemporalConvLayer.conv_reshape (T_in > T_out)
            wfc (c_out, c_in),       bfc (c_out,)    -- OutputLayer.fc (1x1 conv)
    returns (B, c_out, T_out, N) float32
    """
    t_in, t_out = int(n_timesteps_in), int(n_timesteps_out)
    B, c_in, T, N = X.shape
    if T < t_in:
        raise ValueError("input has fewer timesteps than n_timesteps_in")
    x_in = X[:, :, :t_in, :].astype(jnp.float32)    # mirrors X.permute(0,2,1,3)[:, :n_in]

    wfc = params["wfc"].astype(jnp.float32)
    bfc = params["bfc"].astype(jnp.float32)
    c_out = wfc.shape[0]

    # Residual branch selection (static, mirrors TemporalConvLayer.forward).
    pad_lo = pad_hi = 0
    if t_in > t_out:
        residual_mode = "conv"
    elif t_in == t_out:
        residual_mode = "identity"
    else:
        residual_mode = "pad"
        n_pad = round((t_out - t_in) / 2)           # Python banker's rounding, as in the module
        pad_lo = n_pad
        pad_hi = n_pad - 1 if t_in % 2 != 0 else n_pad
        if pad_lo < 0 or pad_lo + t_in + pad_hi != t_out:
            raise ValueError(
                f"zero-pad residual branch is shape-inconsistent for t_in={t_in}, "
                f"t_out={t_out} (the original PyTorch code fails here too)")

    # The module hard-codes Conv2d padding=(1, 0); check the shapes stay consistent.
    h_conv = c_in + 3 - kt
    if h_conv != c_in:
        raise ValueError("OutputLayer is only shape-consistent for kt == 3 "
                         "(Conv2d padding is hard-coded to (1, 0))")

    # Weight re-layout for the kernel: stacked per-tap (kt, rows, t_in) matrices, bias (rows, 1).
    w1 = params["w1"].astype(jnp.float32)           # (2*t_out, t_in, kt)
    b1 = params["b1"].astype(jnp.float32)           # (2*t_out,)
    if residual_mode == "conv":
        w_all = jnp.concatenate([w1, params["wr"].astype(jnp.float32)], axis=0)
        b_all = jnp.concatenate([b1, params["br"].astype(jnp.float32)], axis=0)
    else:
        w_all, b_all = w1, b1
    w_all = jnp.transpose(w_all, (2, 0, 1))         # (kt, rows, t_in)
    b_all = b_all[:, None]                          # (rows, 1)
    rows = int(w_all.shape[1])

    tn = _pick_node_tile(N)
    grid = (B, N // tn)

    smem_spec = pl.BlockSpec(memory_space=pltpu.MemorySpace.SMEM)
    in_specs = [
        pl.BlockSpec((1, c_in, t_in, tn), lambda b, n: (b, 0, 0, n)),
        pl.BlockSpec(w_all.shape, lambda b, n: (0, 0, 0)),   # resident in VMEM
        pl.BlockSpec(b_all.shape, lambda b, n: (0, 0)),
        smem_spec, smem_spec,
    ]
    inputs = [x_in, w_all, b_all, wfc, bfc]

    kernel = _make_output_layer_kernel(
        c_in=c_in, c_out=c_out, t_in=t_in, t_out=t_out, kt=kt, rows=rows,
        residual_mode=residual_mode, pad_lo=pad_lo, pad_hi=pad_hi)

    # Advisory cost estimate so XLA schedules neighbouring glue ops around the fused call.
    flops = 2 * B * c_in * kt * rows * t_in * N + 2 * B * c_in * c_out * t_out * N
    bytes_accessed = 4 * (int(x_in.size) + B * c_out * t_out * N
                          + sum(int(a.size) for a in inputs[1:]))
    cost = pl.CostEstimate(flops=int(flops),
                           transcendentals=int(B * c_in * t_out * N),
                           bytes_accessed=int(bytes_accessed))

    return pl.pallas_call(
        kernel,
        out_shape=jax.ShapeDtypeStruct((B, c_out, t_out, N), jnp.float32),
        grid=grid,
        in_specs=in_specs,
        out_specs=pl.BlockSpec((1, c_out, t_out, tn), lambda b, n: (b, 0, 0, n)),
        compiler_params=pltpu.CompilerParams(
            dimension_semantics=("parallel", "parallel"),
            vmem_limit_bytes=32 * 1024 * 1024),
        cost_estimate=cost,
    )(*inputs)


# ------------------------------- pure-JAX reference -------------------------------

def _reference(X, params, *, n_timesteps_in, n_timesteps_out, kt=3):
    t_in, t_out = n_timesteps_in, n_timesteps_out
    X = X[:, :, :t_in, :]
    Y = jnp.transpose(X, (0, 2, 1, 3))                               # (B, t_in, c_in, N)
    dn = ("NCHW", "OIHW", "NCHW")
    xc = lax.conv_general_dilated(Y, params["w1"][..., None], (1, 1),
                                  ((1, 1), (0, 0)), dimension_numbers=dn)
    xc = xc + params["b1"][None, :, None, None]
    if t_in > t_out:
        xr = lax.conv_general_dilated(Y, params["wr"][..., None], (1, 1),
                                      ((1, 1), (0, 0)), dimension_numbers=dn)
        xr = xr + params["br"][None, :, None, None]
    elif t_in == t_out:
        xr = Y
    else:
        n_pad = round((t_out - t_in) / 2)
        hi = n_pad - 1 if t_in % 2 != 0 else n_pad
        xr = jnp.pad(Y, ((0, 0), (n_pad, hi), (0, 0), (0, 0)))
    h_res = xr.shape[2]
    P = xc[:, :t_out, :h_res, :]
    Q = xc[:, -t_out:, :h_res, :]
    g = (P + xr) * jax.nn.sigmoid(Q)                                 # (B, t_out, c_in, N)
    gp = jnp.transpose(g, (0, 2, 1, 3))                              # (B, c_in, t_out, N)
    out = jnp.einsum("oi,bitn->botn", params["wfc"], gp)
    return out + params["bfc"][None, :, None, None]


# --------------------------------------- main --------------------------------------

if __name__ == "__main__":
    B, c_in, c_out = 2, 4, 2
    t_in, t_out, n_nodes, kt = 8, 4, 128, 3         # T_in > T_out -> conv_reshape residual path

    key = jax.random.PRNGKey(0)
    ks = jax.random.split(key, 7)
    X = jax.random.normal(ks[0], (B, c_in, t_in, n_nodes), dtype=jnp.float32)
    params = {
        "w1":  0.1 * jax.random.normal(ks[1], (2 * t_out, t_in, kt), dtype=jnp.float32),
        "b1":  0.1 * jax.random.normal(ks[2], (2 * t_out,), dtype=jnp.float32),
        "wr":  0.1 * jax.random.normal(ks[3], (t_out, t_in, kt), dtype=jnp.float32),
        "br":  0.1 * jax.random.normal(ks[4], (t_out,), dtype=jnp.float32),
        "wfc": 0.1 * jax.random.normal(ks[5], (c_out, c_in), dtype=jnp.float32),
        "bfc": 0.1 * jax.random.normal(ks[6], (c_out,), dtype=jnp.float32),
    }

    out = output_layer_forward(X, params, n_timesteps_in=t_in,
                               n_timesteps_out=t_out, kt=kt)
    out = jax.block_until_ready(out)

    ref = _reference(X, params, n_timesteps_in=t_in, n_timesteps_out=t_out, kt=kt)
    assert out.shape == (B, c_out, t_out, n_nodes)
    assert jnp.allclose(out, ref, atol=1e-4, rtol=1e-4), \
        float(jnp.max(jnp.abs(out - ref)))

    print("KERNEL_OK")
</pallas_src>

<mosaic_0001>
module attributes {stable_mosaic.version = 11 : i64} {
  func.func @kernel(%arg0: i32, %arg1: i32, %arg2: memref<1x4x8x128xf32, #tpu.memory_space<vmem>>, %arg3: memref<3x12x8xf32, #tpu.memory_space<vmem>>, %arg4: memref<12x1xf32, #tpu.memory_space<vmem>>, %arg5: memref<2x4xf32, #tpu.memory_space<smem>>, %arg6: memref<2xf32, #tpu.memory_space<smem>>, %arg7: memref<1x2x4x128xf32, #tpu.memory_space<vmem>>) attributes {dimension_semantics = [#tpu.dimension_semantics<parallel>, #tpu.dimension_semantics<parallel>], iteration_bounds = array<i64: 2, 1>, scalar_prefetch = 0 : i64, scratch_operands = 0 : i64, tpu.core_type = #tpu.core_type<tc>, window_params = [{transform_indices = @transform_0, window_bounds = array<i64: 1, 4, 8, 128>}, {pipeline_mode = #tpu.pipeline_mode<synchronous>, transform_indices = @transform_1, window_bounds = array<i64: 3, 12, 8>}, {pipeline_mode = #tpu.pipeline_mode<synchronous>, transform_indices = @transform_2, window_bounds = array<i64: 12, 1>}, {transform_indices = @transform_3, window_bounds = array<i64: 2, 4>}, {transform_indices = @transform_4, window_bounds = array<i64: 2>}, {transform_indices = @transform_5, window_bounds = array<i64: 1, 2, 4, 128>}]} {
    %cst = arith.constant 0.000000e+00 : f32
    %0 = vector.broadcast %cst : f32 to vector<4x128xf32>
    %c0 = arith.constant 0 : index
    %1 = memref.load %arg6[%c0] : memref<2xf32, #tpu.memory_space<smem>>
    %2 = vector.broadcast %1 : f32 to vector<4x128xf32>
    %3 = arith.addf %0, %2 : vector<4x128xf32>
    %cst_0 = arith.constant 0.000000e+00 : f32
    %4 = vector.broadcast %cst_0 : f32 to vector<4x128xf32>
    %c1 = arith.constant 1 : index
    %5 = memref.load %arg6[%c1] : memref<2xf32, #tpu.memory_space<smem>>
    %6 = vector.broadcast %5 : f32 to vector<4x128xf32>
    %7 = arith.addf %4, %6 : vector<4x128xf32>
    %cst_1 = arith.constant 0.000000e+00 : f32
    %8 = vector.broadcast %cst_1 : f32 to vector<12x128xf32>
    %c0_2 = arith.constant 0 : index
    %c0_3 = arith.constant 0 : index
    %c0_4 = arith.constant 0 : index
    %c0_5 = arith.constant 0 : index
    %9 = vector.load %arg2[%c0_2, %c0_3, %c0_4, %c0_5] : memref<1x4x8x128xf32, #tpu.memory_space<vmem>>, vector<1x1x8x128xf32>
    %10 = vector.shape_cast %9 : vector<1x1x8x128xf32> to vector<8x128xf32>
    %c1_6 = arith.constant 1 : index
    %c0_7 = arith.constant 0 : index
    %c0_8 = arith.constant 0 : index
    %11 = vector.load %arg3[%c1_6, %c0_7, %c0_8] : memref<3x12x8xf32, #tpu.memory_space<vmem>>, vector<1x12x8xf32>
    %12 = vector.shape_cast %11 : vector<1x12x8xf32> to vector<12x8xf32>
    %cst_9 = arith.constant dense<0.000000e+00> : vector<12x128xf32>
    %13 = tpu.matmul %12, %10, %cst_9 {dimension_numbers = #tpu.dot_dimension_numbers<[1], [0], [0], [1], [0, 0, 1, 1], [], []>} : vector<12x8xf32>, vector<8x128xf32>, vector<12x128xf32> -> vector<12x128xf32>
    %14 = arith.addf %8, %13 : vector<12x128xf32>
    %c0_10 = arith.constant 0 : index
    %c1_11 = arith.constant 1 : index
    %c0_12 = arith.constant 0 : index
    %c0_13 = arith.constant 0 : index
    %15 = vector.load %arg2[%c0_10, %c1_11, %c0_12, %c0_13] : memref<1x4x8x128xf32, #tpu.memory_space<vmem>>, vector<1x1x8x128xf32>
    %16 = vector.shape_cast %15 : vector<1x1x8x128xf32> to vector<8x128xf32>
    %c2 = arith.constant 2 : index
    %c0_14 = arith.constant 0 : index
    %c0_15 = arith.constant 0 : index
    %17 = vector.load %arg3[%c2, %c0_14, %c0_15] : memref<3x12x8xf32, #tpu.memory_space<vmem>>, vector<1x12x8xf32>
    %18 = vector.shape_cast %17 : vector<1x12x8xf32> to vector<12x8xf32>
    %cst_16 = arith.constant dense<0.000000e+00> : vector<12x128xf32>
    %19 = tpu.matmul %18, %16, %cst_16 {dimension_numbers = #tpu.dot_dimension_numbers<[1], [0], [0], [1], [0, 0, 1, 1], [], []>} : vector<12x8xf32>, vector<8x128xf32>, vector<12x128xf32> -> vector<12x128xf32>
    %20 = arith.addf %14, %19 : vector<12x128xf32>
    %c0_17 = arith.constant 0 : index
    %c0_18 = arith.constant 0 : index
    %21 = vector.load %arg4[%c0_17, %c0_18] : memref<12x1xf32, #tpu.memory_space<vmem>>, vector<12x1xf32>
    %22 = vector.broadcast %21 : vector<12x1xf32> to vector<12x128xf32>
    %23 = arith.addf %20, %22 : vector<12x128xf32>
    %24 = vector.extract_strided_slice %23 {offsets = [0, 0], sizes = [4, 128], strides = [1, 1]} : vector<12x128xf32> to vector<4x128xf32>
    %25 = vector.extract_strided_slice %23 {offsets = [4, 0], sizes = [4, 128], strides = [1, 1]} : vector<12x128xf32> to vector<4x128xf32>
    %26 = vector.extract_strided_slice %23 {offsets = [8, 0], sizes = [4, 128], strides = [1, 1]} : vector<12x128xf32> to vector<4x128xf32>
    %cst_19 = arith.constant 0.000000e+00 : f32
    %27 = vector.broadcast %cst_19 : f32 to vector<4x128xf32>
    %28 = arith.subf %27, %25 : vector<4x128xf32>
    %29 = math.exp %28 : vector<4x128xf32>
    %cst_20 = arith.constant 1.000000e+00 : f32
    %30 = vector.broadcast %cst_20 : f32 to vector<4x128xf32>
    %31 = arith.addf %30, %29 : vector<4x128xf32>
    %cst_21 = arith.constant 1.000000e+00 : f32
    %32 = vector.broadcast %cst_21 : f32 to vector<4x128xf32>
    %33 = arith.divf %32, %31 : vector<4x128xf32>
    %34 = arith.addf %24, %26 : vector<4x128xf32>
    %35 = arith.mulf %34, %33 : vector<4x128xf32>
    %c0_22 = arith.constant 0 : index
    %c0_23 = arith.constant 0 : index
    %36 = memref.load %arg5[%c0_22, %c0_23] : memref<2x4xf32, #tpu.memory_space<smem>>
    %37 = vector.broadcast %36 : f32 to vector<4x128xf32>
    %38 = arith.mulf %37, %35 : vector<4x128xf32>
    %39 = arith.addf %3, %38 : vector<4x128xf32>
    %c1_24 = arith.constant 1 : index
    %c0_25 = arith.constant 0 : index
    %40 = memref.load %arg5[%c1_24, %c0_25] : memref<2x4xf32, #tpu.memory_space<smem>>
    %41 = vector.broadcast %40 : f32 to vector<4x128xf32>
    %42 = arith.mulf %41, %35 : vector<4x128xf32>
    %43 = arith.addf %7, %42 : vector<4x128xf32>
    %cst_26 = arith.constant 0.000000e+00 : f32
    %44 = vector.broadcast %cst_26 : f32 to vector<12x128xf32>
    %c0_27 = arith.constant 0 : index
    %c0_28 = arith.constant 0 : index
    %c0_29 = arith.constant 0 : index
    %c0_30 = arith.constant 0 : index
    %45 = vector.load %arg2[%c0_27, %c0_28, %c0_29, %c0_30] : memref<1x4x8x128xf32, #tpu.memory_space<vmem>>, vector<1x1x8x128xf32>
    %46 = vector.shape_cast %45 : vector<1x1x8x128xf32> to vector<8x128xf32>
    %c0_31 = arith.constant 0 : index
    %c0_32 = arith.constant 0 : index
    %c0_33 = arith.constant 0 : index
    %47 = vector.load %arg3[%c0_31, %c0_32, %c0_33] : memref<3x12x8xf32, #tpu.memory_space<vmem>>, vector<1x12x8xf32>
    %48 = vector.shape_cast %47 : vector<1x12x8xf32> to vector<12x8xf32>
    %cst_34 = arith.constant dense<0.000000e+00> : vector<12x128xf32>
    %49 = tpu.matmul %48, %46, %cst_34 {dimension_numbers = #tpu.dot_dimension_numbers<[1], [0], [0], [1], [0, 0, 1, 1], [], []>} : vector<12x8xf32>, vector<8x128xf32>, vector<12x128xf32> -> vector<12x128xf32>
    %50 = arith.addf %44, %49 : vector<12x128xf32>
    %c0_35 = arith.constant 0 : index
    %c1_36 = arith.constant 1 : index
    %c0_37 = arith.constant 0 : index
    %c0_38 = arith.constant 0 : index
    %51 = vector.load %arg2[%c0_35, %c1_36, %c0_37, %c0_38] : memref<1x4x8x128xf32, #tpu.memory_space<vmem>>, vector<1x1x8x128xf32>
    %52 = vector.shape_cast %51 : vector<1x1x8x128xf32> to vector<8x128xf32>
    %c1_39 = arith.constant 1 : index
    %c0_40 = arith.constant 0 : index
    %c0_41 = arith.constant 0 : index
    %53 = vector.load %arg3[%c1_39, %c0_40, %c0_41] : memref<3x12x8xf32, #tpu.memory_space<vmem>>, vector<1x12x8xf32>
    %54 = vector.shape_cast %53 : vector<1x12x8xf32> to vector<12x8xf32>
    %cst_42 = arith.constant dense<0.000000e+00> : vector<12x128xf32>
    %55 = tpu.matmul %54, %52, %cst_42 {dimension_numbers = #tpu.dot_dimension_numbers<[1], [0], [0], [1], [0, 0, 1, 1], [], []>} : vector<12x8xf32>, vector<8x128xf32>, vector<12x128xf32> -> vector<12x128xf32>
    %56 = arith.addf %50, %55 : vector<12x128xf32>
    %c0_43 = arith.constant 0 : index
    %c2_44 = arith.constant 2 : index
    %c0_45 = arith.constant 0 : index
    %c0_46 = arith.constant 0 : index
    %57 = vector.load %arg2[%c0_43, %c2_44, %c0_45, %c0_46] : memref<1x4x8x128xf32, #tpu.memory_space<vmem>>, vector<1x1x8x128xf32>
    %58 = vector.shape_cast %57 : vector<1x1x8x128xf32> to vector<8x128xf32>
    %c2_47 = arith.constant 2 : index
    %c0_48 = arith.constant 0 : index
    %c0_49 = arith.constant 0 : index
    %59 = vector.load %arg3[%c2_47, %c0_48, %c0_49] : memref<3x12x8xf32, #tpu.memory_space<vmem>>, vector<1x12x8xf32>
    %60 = vector.shape_cast %59 : vector<1x12x8xf32> to vector<12x8xf32>
    %cst_50 = arith.constant dense<0.000000e+00> : vector<12x128xf32>
    %61 = tpu.matmul %60, %58, %cst_50 {dimension_numbers = #tpu.dot_dimension_numbers<[1], [0], [0], [1], [0, 0, 1, 1], [], []>} : vector<12x8xf32>, vector<8x128xf32>, vector<12x128xf32> -> vector<12x128xf32>
    %62 = arith.addf %56, %61 : vector<12x128xf32>
    %c0_51 = arith.constant 0 : index
    %c0_52 = arith.constant 0 : index
    %63 = vector.load %arg4[%c0_51, %c0_52] : memref<12x1xf32, #tpu.memory_space<vmem>>, vector<12x1xf32>
    %64 = vector.broadcast %63 : vector<12x1xf32> to vector<12x128xf32>
    %65 = arith.addf %62, %64 : vector<12x128xf32>
    %66 = vector.extract_strided_slice %65 {offsets = [0, 0], sizes = [4, 128], strides = [1, 1]} : vector<12x128xf32> to vector<4x128xf32>
    %67 = vector.extract_strided_slice %65 {offsets = [4, 0], sizes = [4, 128], strides = [1, 1]} : vector<12x128xf32> to vector<4x128xf32>
    %68 = vector.extract_strided_slice %65 {offsets = [8, 0], sizes = [4, 128], strides = [1, 1]} : vector<12x128xf32> to vector<4x128xf32>
    %cst_53 = arith.constant 0.000000e+00 : f32
    %69 = vector.broadcast %cst_53 : f32 to vector<4x128xf32>
    %70 = arith.subf %69, %67 : vector<4x128xf32>
    %71 = math.exp %70 : vector<4x128xf32>
    %cst_54 = arith.constant 1.000000e+00 : f32
    %72 = vector.broadcast %cst_54 : f32 to vector<4x128xf32>
    %73 = arith.addf %72, %71 : vector<4x128xf32>
    %cst_55 = arith.constant 1.000000e+00 : f32
    %74 = vector.broadcast %cst_55 : f32 to vector<4x128xf32>
    %75 = arith.divf %74, %73 : vector<4x128xf32>
    %76 = arith.addf %66, %68 : vector<4x128xf32>
    %77 = arith.mulf %76, %75 : vector<4x128xf32>
    %c0_56 = arith.constant 0 : index
    %c1_57 = arith.constant 1 : index
    %78 = memref.load %arg5[%c0_56, %c1_57] : memref<2x4xf32, #tpu.memory_space<smem>>
    %79 = vector.broadcast %78 : f32 to vector<4x128xf32>
    %80 = arith.mulf %79, %77 : vector<4x128xf32>
    %81 = arith.addf %39, %80 : vector<4x128xf32>
    %c1_58 = arith.constant 1 : index
    %c1_59 = arith.constant 1 : index
    %82 = memref.load %arg5[%c1_58, %c1_59] : memref<2x4xf32, #tpu.memory_space<smem>>
    %83 = vector.broadcast %82 : f32 to vector<4x128xf32>
    %84 = arith.mulf %83, %77 : vector<4x128xf32>
    %85 = arith.addf %43, %84 : vector<4x128xf32>
    %cst_60 = arith.constant 0.000000e+00 : f32
    %86 = vector.broadcast %cst_60 : f32 to vector<12x128xf32>
    %c0_61 = arith.constant 0 : index
    %c1_62 = arith.constant 1 : index
    %c0_63 = arith.constant 0 : index
    %c0_64 = arith.constant 0 : index
    %87 = vector.load %arg2[%c0_61, %c1_62, %c0_63, %c0_64] : memref<1x4x8x128xf32, #tpu.memory_space<vmem>>, vector<1x1x8x128xf32>
    %88 = vector.shape_cast %87 : vector<1x1x8x128xf32> to vector<8x128xf32>
    %c0_65 = arith.constant 0 : index
    %c0_66 = arith.constant 0 : index
    %c0_67 = arith.constant 0 : index
    %89 = vector.load %arg3[%c0_65, %c0_66, %c0_67] : memref<3x12x8xf32, #tpu.memory_space<vmem>>, vector<1x12x8xf32>
    %90 = vector.shape_cast %89 : vector<1x12x8xf32> to vector<12x8xf32>
    %cst_68 = arith.constant dense<0.000000e+00> : vector<12x128xf32>
    %91 = tpu.matmul %90, %88, %cst_68 {dimension_numbers = #tpu.dot_dimension_numbers<[1], [0], [0], [1], [0, 0, 1, 1], [], []>} : vector<12x8xf32>, vector<8x128xf32>, vector<12x128xf32> -> vector<12x128xf32>
    %92 = arith.addf %86, %91 : vector<12x128xf32>
    %c0_69 = arith.constant 0 : index
    %c2_70 = arith.constant 2 : index
    %c0_71 = arith.constant 0 : index
    %c0_72 = arith.constant 0 : index
    %93 = vector.load %arg2[%c0_69, %c2_70, %c0_71, %c0_72] : memref<1x4x8x128xf32, #tpu.memory_space<vmem>>, vector<1x1x8x128xf32>
    %94 = vector.shape_cast %93 : vector<1x1x8x128xf32> to vector<8x128xf32>
    %c1_73 = arith.constant 1 : index
    %c0_74 = arith.constant 0 : index
    %c0_75 = arith.constant 0 : index
    %95 = vector.load %arg3[%c1_73, %c0_74, %c0_75] : memref<3x12x8xf32, #tpu.memory_space<vmem>>, vector<1x12x8xf32>
    %96 = vector.shape_cast %95 : vector<1x12x8xf32> to vector<12x8xf32>
    %cst_76 = arith.constant dense<0.000000e+00> : vector<12x128xf32>
    %97 = tpu.matmul %96, %94, %cst_76 {dimension_numbers = #tpu.dot_dimension_numbers<[1], [0], [0], [1], [0, 0, 1, 1], [], []>} : vector<12x8xf32>, vector<8x128xf32>, vector<12x128xf32> -> vector<12x128xf32>
    %98 = arith.addf %92, %97 : vector<12x128xf32>
    %c0_77 = arith.constant 0 : index
    %c3 = arith.constant 3 : index
    %c0_78 = arith.constant 0 : index
    %c0_79 = arith.constant 0 : index
    %99 = vector.load %arg2[%c0_77, %c3, %c0_78, %c0_79] : memref<1x4x8x128xf32, #tpu.memory_space<vmem>>, vector<1x1x8x128xf32>
    %100 = vector.shape_cast %99 : vector<1x1x8x128xf32> to vector<8x128xf32>
    %c2_80 = arith.constant 2 : index
    %c0_81 = arith.constant 0 : index
    %c0_82 = arith.constant 0 : index
    %101 = vector.load %arg3[%c2_80, %c0_81, %c0_82] : memref<3x12x8xf32, #tpu.memory_space<vmem>>, vector<1x12x8xf32>
    %102 = vector.shape_cast %101 : vector<1x12x8xf32> to vector<12x8xf32>
    %cst_83 = arith.constant dense<0.000000e+00> : vector<12x128xf32>
    %103 = tpu.matmul %102, %100, %cst_83 {dimension_numbers = #tpu.dot_dimension_numbers<[1], [0], [0], [1], [0, 0, 1, 1], [], []>} : vector<12x8xf32>, vector<8x128xf32>, vector<12x128xf32> -> vector<12x128xf32>
    %104 = arith.addf %98, %103 : vector<12x128xf32>
    %c0_84 = arith.constant 0 : index
    %c0_85 = arith.constant 0 : index
    %105 = vector.load %arg4[%c0_84, %c0_85] : memref<12x1xf32, #tpu.memory_space<vmem>>, vector<12x1xf32>
    %106 = vector.broadcast %105 : vector<12x1xf32> to vector<12x128xf32>
    %107 = arith.addf %104, %106 : vector<12x128xf32>
    %108 = vector.extract_strided_slice %107 {offsets = [0, 0], sizes = [4, 128], strides = [1, 1]} : vector<12x128xf32> to vector<4x128xf32>
    %109 = vector.extract_strided_slice %107 {offsets = [4, 0], sizes = [4, 128], strides = [1, 1]} : vector<12x128xf32> to vector<4x128xf32>
    %110 = vector.extract_strided_slice %107 {offsets = [8, 0], sizes = [4, 128], strides = [1, 1]} : vector<12x128xf32> to vector<4x128xf32>
    %cst_86 = arith.constant 0.000000e+00 : f32
    %111 = vector.broadcast %cst_86 : f32 to vector<4x128xf32>
    %112 = arith.subf %111, %109 : vector<4x128xf32>
    %113 = math.exp %112 : vector<4x128xf32>
    %cst_87 = arith.constant 1.000000e+00 : f32
    %114 = vector.broadcast %cst_87 : f32 to vector<4x128xf32>
    %115 = arith.addf %114, %113 : vector<4x128xf32>
    %cst_88 = arith.constant 1.000000e+00 : f32
    %116 = vector.broadcast %cst_88 : f32 to vector<4x128xf32>
    %117 = arith.divf %116, %115 : vector<4x128xf32>
    %118 = arith.addf %108, %110 : vector<4x128xf32>
    %119 = arith.mulf %118, %117 : vector<4x128xf32>
    %c0_89 = arith.constant 0 : index
    %c2_90 = arith.constant 2 : index
    %120 = memref.load %arg5[%c0_89, %c2_90] : memref<2x4xf32, #tpu.memory_space<smem>>
    %121 = vector.broadcast %120 : f32 to vector<4x128xf32>
    %122 = arith.mulf %121, %119 : vector<4x128xf32>
    %123 = arith.addf %81, %122 : vector<4x128xf32>
    %c1_91 = arith.constant 1 : index
    %c2_92 = arith.constant 2 : index
    %124 = memref.load %arg5[%c1_91, %c2_92] : memref<2x4xf32, #tpu.memory_space<smem>>
    %125 = vector.broadcast %124 : f32 to vector<4x128xf32>
    %126 = arith.mulf %125, %119 : vector<4x128xf32>
    %127 = arith.addf %85, %126 : vector<4x128xf32>
    %cst_93 = arith.constant 0.000000e+00 : f32
    %128 = vector.broadcast %cst_93 : f32 to vector<12x128xf32>
    %c0_94 = arith.constant 0 : index
    %c2_95 = arith.constant 2 : index
    %c0_96 = arith.constant 0 : index
    %c0_97 = arith.constant 0 : index
    %129 = vector.load %arg2[%c0_94, %c2_95, %c0_96, %c0_97] : memref<1x4x8x128xf32, #tpu.memory_space<vmem>>, vector<1x1x8x128xf32>
    %130 = vector.shape_cast %129 : vector<1x1x8x128xf32> to vector<8x128xf32>
    %c0_98 = arith.constant 0 : index
    %c0_99 = arith.constant 0 : index
    %c0_100 = arith.constant 0 : index
    %131 = vector.load %arg3[%c0_98, %c0_99, %c0_100] : memref<3x12x8xf32, #tpu.memory_space<vmem>>, vector<1x12x8xf32>
    %132 = vector.shape_cast %131 : vector<1x12x8xf32> to vector<12x8xf32>
    %cst_101 = arith.constant dense<0.000000e+00> : vector<12x128xf32>
    %133 = tpu.matmul %132, %130, %cst_101 {dimension_numbers = #tpu.dot_dimension_numbers<[1], [0], [0], [1], [0, 0, 1, 1], [], []>} : vector<12x8xf32>, vector<8x128xf32>, vector<12x128xf32> -> vector<12x128xf32>
    %134 = arith.addf %128, %133 : vector<12x128xf32>
    %c0_102 = arith.constant 0 : index
    %c3_103 = arith.constant 3 : index
    %c0_104 = arith.constant 0 : index
    %c0_105 = arith.constant 0 : index
    %135 = vector.load %arg2[%c0_102, %c3_103, %c0_104, %c0_105] : memref<1x4x8x128xf32, #tpu.memory_space<vmem>>, vector<1x1x8x128xf32>
    %136 = vector.shape_cast %135 : vector<1x1x8x128xf32> to vector<8x128xf32>
    %c1_106 = arith.constant 1 : index
    %c0_107 = arith.constant 0 : index
    %c0_108 = arith.constant 0 : index
    %137 = vector.load %arg3[%c1_106, %c0_107, %c0_108] : memref<3x12x8xf32, #tpu.memory_space<vmem>>, vector<1x12x8xf32>
    %138 = vector.shape_cast %137 : vector<1x12x8xf32> to vector<12x8xf32>
    %cst_109 = arith.constant dense<0.000000e+00> : vector<12x128xf32>
    %139 = tpu.matmul %138, %136, %cst_109 {dimension_numbers = #tpu.dot_dimension_numbers<[1], [0], [0], [1], [0, 0, 1, 1], [], []>} : vector<12x8xf32>, vector<8x128xf32>, vector<12x128xf32> -> vector<12x128xf32>
    %140 = arith.addf %134, %139 : vector<12x128xf32>
    %c0_110 = arith.constant 0 : index
    %c0_111 = arith.constant 0 : index
    %141 = vector.load %arg4[%c0_110, %c0_111] : memref<12x1xf32, #tpu.memory_space<vmem>>, vector<12x1xf32>
    %142 = vector.broadcast %141 : vector<12x1xf32> to vector<12x128xf32>
    %143 = arith.addf %140, %142 : vector<12x128xf32>
    %144 = vector.extract_strided_slice %143 {offsets = [0, 0], sizes = [4, 128], strides = [1, 1]} : vector<12x128xf32> to vector<4x128xf32>
    %145 = vector.extract_strided_slice %143 {offsets = [4, 0], sizes = [4, 128], strides = [1, 1]} : vector<12x128xf32> to vector<4x128xf32>
    %146 = vector.extract_strided_slice %143 {offsets = [8, 0], sizes = [4, 128], strides = [1, 1]} : vector<12x128xf32> to vector<4x128xf32>
    %cst_112 = arith.constant 0.000000e+00 : f32
    %147 = vector.broadcast %cst_112 : f32 to vector<4x128xf32>
    %148 = arith.subf %147, %145 : vector<4x128xf32>
    %149 = math.exp %148 : vector<4x128xf32>
    %cst_113 = arith.constant 1.000000e+00 : f32
    %150 = vector.broadcast %cst_113 : f32 to vector<4x128xf32>
    %151 = arith.addf %150, %149 : vector<4x128xf32>
    %cst_114 = arith.constant 1.000000e+00 : f32
    %152 = vector.broadcast %cst_114 : f32 to vector<4x128xf32>
    %153 = arith.divf %152, %151 : vector<4x128xf32>
    %154 = arith.addf %144, %146 : vector<4x128xf32>
    %155 = arith.mulf %154, %153 : vector<4x128xf32>
    %c0_115 = arith.constant 0 : index
    %c3_116 = arith.constant 3 : index
    %156 = memref.load %arg5[%c0_115, %c3_116] : memref<2x4xf32, #tpu.memory_space<smem>>
    %157 = vector.broadcast %156 : f32 to vector<4x128xf32>
    %158 = arith.mulf %157, %155 : vector<4x128xf32>
    %159 = arith.addf %123, %158 : vector<4x128xf32>
    %c1_117 = arith.constant 1 : index
    %c3_118 = arith.constant 3 : index
    %160 = memref.load %arg5[%c1_117, %c3_118] : memref<2x4xf32, #tpu.memory_space<smem>>
    %161 = vector.broadcast %160 : f32 to vector<4x128xf32>
    %162 = arith.mulf %161, %155 : vector<4x128xf32>
    %163 = arith.addf %127, %162 : vector<4x128xf32>
    %c0_119 = arith.constant 0 : index
    %c0_120 = arith.constant 0 : index
    %c0_121 = arith.constant 0 : index
    %c0_122 = arith.constant 0 : index
    %164 = vector.load %arg7[%c0_119, %c0_120, %c0_121, %c0_122] : memref<1x2x4x128xf32, #tpu.memory_space<vmem>>, vector<1x1x4x128xf32>
    %165 = vector.shape_cast %164 : vector<1x1x4x128xf32> to vector<4x128xf32>
    %166 = vector.shape_cast %159 : vector<4x128xf32> to vector<1x1x4x128xf32>
    tpu.vector_store %arg7[%c0_119, %c0_120, %c0_121, %c0_122], %166 {strides = array<i32>} : memref<1x2x4x128xf32, #tpu.memory_space<vmem>>, vector<1x1x4x128xf32>,
    %c0_123 = arith.constant 0 : index
    %c1_124 = arith.constant 1 : index
    %c0_125 = arith.constant 0 : index
    %c0_126 = arith.constant 0 : index
    %167 = vector.load %arg7[%c0_123, %c1_124, %c0_125, %c0_126] : memref<1x2x4x128xf32, #tpu.memory_space<vmem>>, vector<1x1x4x128xf32>
    %168 = vector.shape_cast %167 : vector<1x1x4x128xf32> to vector<4x128xf32>
    %169 = vector.shape_cast %163 : vector<4x128xf32> to vector<1x1x4x128xf32>
    tpu.vector_store %arg7[%c0_123, %c1_124, %c0_125, %c0_126], %169 {strides = array<i32>} : memref<1x2x4x128xf32, #tpu.memory_space<vmem>>, vector<1x1x4x128xf32>,
    return
  }
  func.func @transform_0(%arg0: i32, %arg1: i32) -> (i32, i32, i32, i32) {
    %c0_i32 = arith.constant 0 : i32
    %c0_i32_0 = arith.constant 0 : i32
    %c0_i32_1 = arith.constant 0 : i32
    return %arg0, %c0_i32, %c0_i32_0, %arg1 : i32, i32, i32, i32
  }
  func.func @transform_1(%arg0: i32, %arg1: i32) -> (i32, i32, i32) {
    %c0_i32 = arith.constant 0 : i32
    %c0_i32_0 = arith.constant 0 : i32
    %c0_i32_1 = arith.constant 0 : i32
    %c0_i32_2 = arith.constant 0 : i32
    return %c0_i32, %c0_i32_0, %c0_i32_1 : i32, i32, i32
  }
  func.func @transform_2(%arg0: i32, %arg1: i32) -> (i32, i32) {
    %c0_i32 = arith.constant 0 : i32
    %c0_i32_0 = arith.constant 0 : i32
    %c0_i32_1 = arith.constant 0 : i32
    return %c0_i32, %c0_i32_0 : i32, i32
  }
  func.func @transform_3(%arg0: i32, %arg1: i32) -> (i32, i32) {
    %c0_i32 = arith.constant 0 : i32
    %c0_i32_0 = arith.constant 0 : i32
    %c0_i32_1 = arith.constant 0 : i32
    return %c0_i32, %c0_i32_0 : i32, i32
  }
  func.func @transform_4(%arg0: i32, %arg1: i32) -> i32 {
    %c0_i32 = arith.constant 0 : i32
    %c0_i32_0 = arith.constant 0 : i32
    return %c0_i32 : i32
  }
  func.func @transform_5(%arg0: i32, %arg1: i32) -> (i32, i32, i32, i32) {
    %c0_i32 = arith.constant 0 : i32
    %c0_i32_0 = arith.constant 0 : i32
    %c0_i32_1 = arith.constant 0 : i32
    return %arg0, %c0_i32, %c0_i32_0, %arg1 : i32, i32, i32, i32
  }
}

</mosaic_0001>

<llo_original>
// kernel: tpu_custom_call.1
$region0: #{tpu_custom_call.1}
  #allocation0 [shape = 'u32[]', space=smem, size = 0x4, offset = 0x4, fixed_abs, tag = 'smem constant byte address 0x4 - core index']
  #allocation1 [shape = 'u32[72,128]{1,0:T(1,128)}', space=vmem, size = 0x9000, scoped, tag = 'internal scratch']
  %s0 = inlined_call_operand.vmem [shape: f32[2,4,8,128], index: 0, kind: input, shape index: {}]
  %s1 = inlined_call_operand.vmem [shape: f32[3,12,8], index: 1, kind: input, shape index: {}]
  %s2 = inlined_call_operand.vmem [shape: f32[12,1], index: 2, kind: input, shape index: {}]
  %s3 = inlined_call_operand.vmem [shape: f32[2,4], index: 3, kind: input, shape index: {}]
  %s4 = inlined_call_operand.vmem [shape: f32[2], index: 4, kind: input, shape index: {}]
  %s5 = inlined_call_operand.hbm [shape: f32[2,2,4,128], index: 5, kind: output, shape index: {}]
  %s6 = sld [smem:[#allocation0]]
  $region61: #{tpu_custom_call.1} parent=0
    _
  %s8 = ssub.s32 1, %s6
  %s9 = scalar_select 0, %s8, %s6
  $region1: #{tpu_custom_call.1} parent=0
    #allocation2 [shape = 'u8[1024]{0}', space=smem, size = 0x400, scoped, tag = 'input window, operand 3, single buffered']
    #allocation3 [shape = 's32[2]{0}', space=sflag, size = 0x8, scoped, tag = 'scoped memory for tpu_custom_call.1']
    #allocation4 [shape = 's32[2]{0}', space=sflag, size = 0x8, scoped, tag = 'scoped memory for tpu_custom_call.1']
    #allocation5 [shape = 'u8[512]{0}', space=smem, size = 0x200, scoped, tag = 'input window, operand 4, single buffered']
    #allocation6 [shape = 's32[1]{0}', space=sflag, size = 0x4, scoped, tag = 'scoped memory for tpu_custom_call.1']
    #allocation7 [shape = 'u8[8192]{0}', space=vmem, size = 0x2000, scoped, tag = 'output window, operand 0']
    %10 = vsyncpa [#allocation4], 0
    %11 = vsyncpa [#allocation6], 0
    %12 = vsyncpa [#allocation3], 0
    %s13 = scalar_lea.sflag [#allocation3], 1
    %14 = vsyncpa %s13, 0
    loop: start=0, step=1, limit=4
    $region2: #{tpu_custom_call.1} parent=1 // loop_pre_header
      _
    $region3: #{tpu_custom_call.1} parent=1 // loop_header
      %s16 = sphi 0, %s20
      %p17 = scmp.ge.s32.totalorder %s16, 4
      %s23 = sphi 0, %s35
      %s24 = sphi 0, %s31
      %s25 = sphi 0, %s23
      %s26 = sphi 0, %s24
      %s27 = sphi 0, %s25
      %s28 = sphi 0, %s26
      %s40 = sphi 0, %s42
      %s43 = sphi 0, %s40
      %s44 = sphi 0, %s43
      %s60 = sphi 0, %s44
      %s64 = sphi 0, %s64
      %s66 = sphi 0, %s64
      %s67 = sphi 0, %s66
      %s81 = sphi 0, %s67
      %s85 = sphi 0, %s85
      %s87 = sphi 0, %s85
      %s88 = sphi 0, %s87
      %s102 = sphi 0, %s88
      %s106 = sphi 0, %s106
      %s108 = sphi 0, %s106
      %s109 = sphi 0, %s108
      %s123 = sphi 0, %s109
      %s127 = sphi 0, %s127
      %s129 = sphi 0, %s127
      %s130 = sphi 0, %s129
      %s144 = sphi 0, %s130
      %s152 = sphi 0, %s154
      %s155 = sphi 0, %s152
      %s156 = sphi 0, %s155
      %s172 = sphi 0, %s156
    $region4: #{tpu_custom_call.1} parent=1 // loop_header_branch
      %19 = sbr.rel (%p17) target = $region8
    $region5: #{tpu_custom_call.1} parent=1 // loop_body
      %s21 = ssub.s32 %s16, 1
      %s22 = ssub.s32 %s16, 2
      %s29 = sadd.s32 1, %s24
      %p30 = scmp.ge.s32.totalorder %s29, 1
      %s31 = scalar_select %p30, 0, %s29
      %s32 = sadd.s32 1, %s23
      %s33 = scalar_select %p30, %s32, %s23
      %p34 = scmp.ge.s32.totalorder %s33, 2
      %s35 = scalar_select %p34, 0, %s33
      %s36 = ssub.s32 %s23, %s35
      %s37 = ssub.s32 %s24, %s31
      %s38 = sor.u32 %s36, %s37
      %p39 = scmp.eq.s32.totalorder %s38, 0
      %s41 = sadd.s32 %s40, 1
      %s42 = scalar_select %p39, %s40, %s41
      %p45 = pneg %p39
      %p46 = scmp.eq.s32.totalorder %s16, 1
      %p47 = por %p45, %p46
      %p48 = scmp.ne.s32.totalorder %s40, %s43
      %p49 = scmp.eq.s32.totalorder %s16, 0
      %p50 = por %p48, %p49
      %p51 = scmp.ne.s32.totalorder %s40, %s43
      %p52 = scmp.eq.s32.totalorder %s21, 1
      %p53 = por %p51, %p52
      %p54 = scmp.ne.s32.totalorder %s43, %s44
      %p55 = scmp.eq.s32.totalorder %s21, 0
      %p56 = por %p54, %p55
      %p57 = scmp.ne.s32.totalorder %s43, %s44
      %p58 = scmp.eq.s32.totalorder %s22, 1
      %p59 = por %p57, %p58
      %p61 = scmp.ne.s32.totalorder %s44, %s60
      %p62 = scmp.eq.s32.totalorder %s22, 0
      %p63 = por %p61, %p62
      %s65 = sadd.s32 %s64, 1
      %p68 = scmp.eq.s32.totalorder %s16, 1
      %p69 = scmp.ne.s32.totalorder %s64, %s66
      %p70 = scmp.eq.s32.totalorder %s16, 0
      %p71 = por %p69, %p70
      %p72 = scmp.ne.s32.totalorder %s64, %s66
      %p73 = scmp.eq.s32.totalorder %s21, 1
      %p74 = por %p72, %p73
      %p75 = scmp.ne.s32.totalorder %s66, %s67
      %p76 = scmp.eq.s32.totalorder %s21, 0
      %p77 = por %p75, %p76
      %p78 = scmp.ne.s32.totalorder %s66, %s67
      %p79 = scmp.eq.s32.totalorder %s22, 1
      %p80 = por %p78, %p79
      %p82 = scmp.ne.s32.totalorder %s67, %s81
      %p83 = scmp.eq.s32.totalorder %s22, 0
      %p84 = por %p82, %p83
      %s86 = sadd.s32 %s85, 1
      %p89 = scmp.eq.s32.totalorder %s16, 1
      %p90 = scmp.ne.s32.totalorder %s85, %s87
      %p91 = scmp.eq.s32.totalorder %s16, 0
      %p92 = por %p90, %p91
      %p93 = scmp.ne.s32.totalorder %s85, %s87
      %p94 = scmp.eq.s32.totalorder %s21, 1
      %p95 = por %p93, %p94
      %p96 = scmp.ne.s32.totalorder %s87, %s88
      %p97 = scmp.eq.s32.totalorder %s21, 0
      %p98 = por %p96, %p97
      %p99 = scmp.ne.s32.totalorder %s87, %s88
      %p100 = scmp.eq.s32.totalorder %s22, 1
      %p101 = por %p99, %p100
      %p103 = scmp.ne.s32.totalorder %s88, %s102
      %p104 = scmp.eq.s32.totalorder %s22, 0
      %p105 = por %p103, %p104
      %s107 = sadd.s32 %s106, 1
      %p110 = scmp.eq.s32.totalorder %s16, 1
      %p111 = scmp.ne.s32.totalorder %s106, %s108
      %p112 = scmp.eq.s32.totalorder %s16, 0
      %p113 = por %p111, %p112
      %p114 = scmp.ne.s32.totalorder %s106, %s108
      %p115 = scmp.eq.s32.totalorder %s21, 1
      %p116 = por %p114, %p115
      %p117 = scmp.ne.s32.totalorder %s108, %s109
      %p118 = scmp.eq.s32.totalorder %s21, 0
      %p119 = por %p117, %p118
      %p120 = scmp.ne.s32.totalorder %s108, %s109
      %p121 = scmp.eq.s32.totalorder %s22, 1
      %p122 = por %p120, %p121
      %p124 = scmp.ne.s32.totalorder %s109, %s123
      %p125 = scmp.eq.s32.totalorder %s22, 0
      %p126 = por %p124, %p125
      %s128 = sadd.s32 %s127, 1
      %p131 = scmp.eq.s32.totalorder %s16, 1
      %p132 = scmp.ne.s32.totalorder %s127, %s129
      %p133 = scmp.eq.s32.totalorder %s16, 0
      %p134 = por %p132, %p133
      %p135 = scmp.ne.s32.totalorder %s127, %s129
      %p136 = scmp.eq.s32.totalorder %s21, 1
      %p137 = por %p135, %p136
      %p138 = scmp.ne.s32.totalorder %s129, %s130
      %p139 = scmp.eq.s32.totalorder %s21, 0
      %p140 = por %p138, %p139
      %p141 = scmp.ne.s32.totalorder %s129, %s130
      %p142 = scmp.eq.s32.totalorder %s22, 1
      %p143 = por %p141, %p142
      %p145 = scmp.ne.s32.totalorder %s130, %s144
      %p146 = scmp.eq.s32.totalorder %s22, 0
      %p147 = por %p145, %p146
      %s148 = ssub.s32 %s23, %s35
      %s149 = ssub.s32 %s24, %s31
      %s150 = sor.u32 %s148, %s149
      %p151 = scmp.eq.s32.totalorder %s150, 0
      %s153 = sadd.s32 %s152, 1
      %s154 = scalar_select %p151, %s152, %s153
      %p157 = pneg %p151
      %p158 = scmp.eq.s32.totalorder %s16, 1
      %p159 = por %p157, %p158
      %p160 = scmp.ne.s32.totalorder %s152, %s155
      %p161 = scmp.eq.s32.totalorder %s16, 0
      %p162 = por %p160, %p161
      %p163 = scmp.ne.s32.totalorder %s152, %s155
      %p164 = scmp.eq.s32.totalorder %s21, 1
      %p165 = por %p163, %p164
      %p166 = scmp.ne.s32.totalorder %s155, %s156
      %p167 = scmp.eq.s32.totalorder %s21, 0
      %p168 = por %p166, %p167
      %p169 = scmp.ne.s32.totalorder %s155, %s156
      %p170 = scmp.eq.s32.totalorder %s22, 1
      %p171 = por %p169, %p170
      %p173 = scmp.ne.s32.totalorder %s156, %s172
      %p174 = scmp.eq.s32.totalorder %s22, 0
      %p175 = por %p173, %p174
      %p176 = scmp.le.s32.totalorder 1, %s16
      %p177 = scmp.lt.s32.totalorder %s16, 3
      %p178 = pnand %p176, %p177
      %p179 = pneg %p178
      // Predicated region
      $region9: #{tpu_custom_call.1} parent=5 // pred_check
        _
      $region10: #{tpu_custom_call.1} parent=5 // pred_check_branch
        %181 = sbr.rel (%p178) target = $region12
      $region11: #{tpu_custom_call.1} parent=5 // pred_region
        %s182 = ssub.s32 %s16, 1
        // Predicated region
        $region13: #{tpu_custom_call.1} parent=11 // pred_check
          %p183 = pneg %p77
        $region14: #{tpu_custom_call.1} parent=11 // pred_check_branch
          %185 = sbr.rel (%p183) target = $region16
        $region15: #{tpu_custom_call.1} parent=11 // pred_region
          _
        $region16: #{tpu_custom_call.1} parent=11 // pred_fallthru
          _
        // Predicated region
        $region17: #{tpu_custom_call.1} parent=11 // pred_check
          %p186 = pneg %p98
        $region18: #{tpu_custom_call.1} parent=11 // pred_check_branch
          %188 = sbr.rel (%p186) target = $region20
        $region19: #{tpu_custom_call.1} parent=11 // pred_region
          _
        $region20: #{tpu_custom_call.1} parent=11 // pred_fallthru
          _
        // Predicated region
        $region21: #{tpu_custom_call.1} parent=11 // pred_check
          %p189 = pneg %p119
        $region22: #{tpu_custom_call.1} parent=11 // pred_check_branch
          %191 = sbr.rel (%p189) target = $region24
        $region23: #{tpu_custom_call.1} parent=11 // pred_region
          %193 = vsyncadd [#allocation4], 0
          %s195 = sshll.u32 %s3, 4
          %s196 = int_to_ptr.vmem [resolvable:$true] %s195
          %198 = dma.vmem_to_smem %s196, 32, [#allocation2], [#allocation4]
        $region24: #{tpu_custom_call.1} parent=11 // pred_fallthru
          _
        // Predicated region
        $region25: #{tpu_custom_call.1} parent=11 // pred_check
          %p199 = pneg %p140
        $region26: #{tpu_custom_call.1} parent=11 // pred_check_branch
          %201 = sbr.rel (%p199) target = $region28
        $region27: #{tpu_custom_call.1} parent=11 // pred_region
          %203 = vsyncadd [#allocation6], 0
          %s205 = sshll.u32 %s4, 4
          %s206 = int_to_ptr.vmem [resolvable:$true] %s205
          %208 = dma.vmem_to_smem %s206, 16, [#allocation5], [#allocation6]
        $region28: #{tpu_custom_call.1} parent=11 // pred_fallthru
          _
      $region12: #{tpu_custom_call.1} parent=5 // pred_fallthru
        _
      %p209 = scmp.lt.s32.totalorder %s16, 2
      // Predicated region
      $region29: #{tpu_custom_call.1} parent=5 // pred_check
        %p210 = pneg %p209
      $region30: #{tpu_custom_call.1} parent=5 // pred_check_branch
        %212 = sbr.rel (%p210) target = $region32
      $region31: #{tpu_custom_call.1} parent=5 // pred_region
        // Predicated region
        $region33: #{tpu_custom_call.1} parent=31 // pred_check
          %p213 = pneg %p50
        $region34: #{tpu_custom_call.1} parent=31 // pred_check_branch
          %215 = sbr.rel (%p213) target = $region36
        $region35: #{tpu_custom_call.1} parent=31 // pred_region
          %p216 = scmp.lt.s32.totalorder %s23, 1
          %s217 = scalar_select %p216, %s23, 1
          %p218 = scmp.lt.s32.totalorder %s24, 0
          %s219 = scalar_select %p218, %s24, 0
          %s220 = smul.addr %s217, 4
          %s221 = sadd.s32 %s219, %s220
          %s222 = smul.addr %s221, 8
          %s223 = scalar_lea.vmem %s0, %s222
        $region36: #{tpu_custom_call.1} parent=31 // pred_fallthru
          _
      $region32: #{tpu_custom_call.1} parent=5 // pred_fallthru
        _
      %p224 = scmp.le.s32.totalorder 1, %s16
      %p225 = scmp.lt.s32.totalorder %s16, 3
      %p226 = pnand %p224, %p225
      %p227 = pneg %p226
      // Predicated region
      $region37: #{tpu_custom_call.1} parent=5 // pred_check
        _
      $region38: #{tpu_custom_call.1} parent=5 // pred_check_branch
        %229 = sbr.rel (%p226) target = $region40
      $region39: #{tpu_custom_call.1} parent=5 // pred_region
        %s230 = ssub.s32 %s16, 1
        // Predicated region
        $region41: #{tpu_custom_call.1} parent=39 // pred_check
          %p231 = pneg %p119
        $region42: #{tpu_custom_call.1} parent=39 // pred_check_branch
          %233 = sbr.rel (%p231) target = $region44
        $region43: #{tpu_custom_call.1} parent=39 // pred_region
          %235 = dma.done [#allocation4], 32
        $region44: #{tpu_custom_call.1} parent=39 // pred_fallthru
          _
        // Predicated region
        $region45: #{tpu_custom_call.1} parent=39 // pred_check
          %p236 = pneg %p140
        $region46: #{tpu_custom_call.1} parent=39 // pred_check_branch
          %238 = sbr.rel (%p236) target = $region48
        $region47: #{tpu_custom_call.1} parent=39 // pred_region
          %240 = dma.done [#allocation6], 16
        $region48: #{tpu_custom_call.1} parent=39 // pred_fallthru
          _
        %241 = sfence
        %p242 = scmp.lt.s32.totalorder %s25, 1
        %s243 = scalar_select %p242, %s25, 1
        %p244 = scmp.lt.s32.totalorder %s26, 0
        %s245 = scalar_select %p244, %s26, 0
        %s246 = smul.addr %s243, 4
        %s247 = sadd.s32 %s245, %s246
        %s248 = smul.addr %s247, 8
        %s249 = scalar_lea.vmem %s0, %s248
        %p250 = pneg %p56
        %p251 = pneg %p53
        %p252 = pneg %p77
        %p253 = pneg %p74
        %p254 = pneg %p98
        %p255 = pneg %p95
        %p256 = pneg %p119
        %p257 = pneg %p116
        %p258 = pneg %p140
        %p259 = pneg %p137
        %p260 = pneg %p168
        %p261 = pneg %p165
        %s262 = sand.u32 %s155, 1
        %s263 = scalar_lea.sflag [#allocation3], %s262
        %s264 = sand.u32 %s155, 1
        %s265 = smul.addr %s264, 8
        %s266 = scalar_lea.vmem [#allocation7], %s265
        %p267 = scmp.lt.s32.totalorder %s25, 1
        %s268 = scalar_select %p267, %s25, 1
        %p269 = scmp.lt.s32.totalorder %s26, 0
        %s270 = scalar_select %p269, %s26, 0
        %s271 = smul.addr %s268, 4
        %s272 = sadd.s32 %s270, %s271
        %s273 = smul.addr %s272, 8
        %s274 = scalar_lea.vmem %s0, %s273
        %s275 = sld [smem:[#allocation5]]
        %v276 = vstv %s275
        %v277 = vadd.f32 %v276, 0.0
        %s278 = sld [smem:[#allocation5 + $0x1]]
        %v279 = vstv %s278
        %v280 = vadd.f32 %v279, 0.0
        %v281 = vld [vmem:[%s274] sm:$0xff]
        %s282 = scalar_lea.vmem %s1, 16
        %v283 = vld [vmem:[%s282] sm:$0xff]
        %v284 = vld [vmem:[%s282 + $0x8] sm:$0xf]
        %s285 = scalar_lea.vmem %s274, 8
        %v286 = vld [vmem:[%s285] sm:$0xff]
        %s287 = scalar_lea.vmem %s1, 32
        %v288 = vld [vmem:[%s287] sm:$0xff]
        %v289 = vld [vmem:[%s287 + $0x8] sm:$0xf]
        %vm290 = vcmask 64512
        %v292 = vsel %vm290, %v288, 0
        %v295 = vsel %vm290, %v289, 0
        %297 = vmatpush.msra.mxu0 0.0
        %298 = vmatpush.msra.mxu0 0.0
        %299 = vmatpush.msra.mxu0 0.0
        %300 = vmatpush.msra.mxu0 0.0
        %301 = vmatpush.msra.mxu0 0.0
        %302 = vmatpush.msra.mxu0 0.0
        %303 = vmatpush.msra.mxu0 0.0
        %304 = vmatpush.msra.mxu0 0.0
        %305 = vmatpush.msra.mxu0 0.0
        %306 = vmatpush.msra.mxu0 0.0
        %307 = vmatpush.msra.mxu0 0.0
        %308 = vmatpush.msra.mxu0 0.0
        %309 = vmatpush.msra.mxu0 0.0
        %310 = vmatpush.msra.mxu0 0.0
        %311 = vmatpush.msra.mxu0 0.0
        %312 = vmatpush.msra.mxu0 %v286
        %313 = vmatmul.f32.gmra.mxu0 %v292
        %v314 = vpop.f32.mrf.mxu0
        %v315 = vadd.f32 0.0, %v314
        %316 = vmatmul.f32.gmra.mxu0 %v295
        %v317 = vpop.f32.mrf.mxu0
        %v318 = vadd.f32 0.0, %v317
        %319 = vdwg.mxu0
        %v321 = vsel %vm290, %v283, 0
        %v324 = vsel %vm290, %v284, 0
        %326 = vmatpush.msra.mxu0 0.0
        %327 = vmatpush.msra.mxu0 0.0
        %328 = vmatpush.msra.mxu0 0.0
        %329 = vmatpush.msra.mxu0 0.0
        %330 = vmatpush.msra.mxu0 0.0
        %331 = vmatpush.msra.mxu0 0.0
        %332 = vmatpush.msra.mxu0 0.0
        %333 = vmatpush.msra.mxu0 0.0
        %334 = vmatpush.msra.mxu0 0.0
        %335 = vmatpush.msra.mxu0 0.0
        %336 = vmatpush.msra.mxu0 0.0
        %337 = vmatpush.msra.mxu0 0.0
        %338 = vmatpush.msra.mxu0 0.0
        %339 = vmatpush.msra.mxu0 0.0
        %340 = vmatpush.msra.mxu0 0.0
        %341 = vmatpush.msra.mxu0 %v281
        %342 = vmatmul.f32.gmra.mxu0 %v321
        %v343 = vpop.f32.mrf.mxu0
        %v344 = vadd.f32 %v315, %v343
        %345 = vmatmul.f32.gmra.mxu0 %v324
        %v346 = vpop.f32.mrf.mxu0
        %v347 = vadd.f32 %v318, %v346
        %348 = vdwg.mxu0
        %v349 = vld [vmem:[%s2] sm:$0xff]
        %v350 = vld [vmem:[%s2 + $0x8] sm:$0xf]
        %352 = vset.pattern.permute.xlu0 0
        %353 = vperm.xlu0 %352, %v349
        %v354 = vpop.permute.xlu0 %353
        %357 = vset.pattern.permute.xlu0 0
        %358 = vperm.xlu0 %357, %v350
        %v359 = vpop.permute.xlu0 %358
        %v361 = vadd.f32 %v344, %v354
        %v362 = vadd.f32 %v347, %v359
        %v363 = vsub.f32 0.0, %v361
        %v364 = vmul.f32 %v363, 1.442695
        %v365 = vpow.pop %v364
        %v366 = vadd.f32 %v365, 1.0
        %v367 = vrcp.pop %v366
        %v368 = vmul.f32 %v366, %v367
        %v369 = vsub.f32 1.0, %v368
        %v370 = vmul.f32 %v367, %v369
        %v371 = vadd.f32 %v367, %v370
        %vm372 = vweird.f32 %v366
        %vm373 = vweird.f32 %v367
        %vm374 = vmor %vm372, %vm373
        %v375 = vsel %vm374, %v367, %v371
        %v376 = vand.u32 2147483647, %v366
        %vm377 = vcmp.eq.f32.partialorder %v376, 8.507059e+37
        %v378 = vand.u32 %v366, 2147483648
        %v379 = vor.u32 1.1754944e-38, %v378
        %v380 = vsel %vm377, %v379, %v375
        %v381 = vmul.f32 1.0, %v380
        %v382 = vadd.f32 %v361, %v362
        %v384 = vrot.slane %v381, 4
        %v386 = vmul.f32 %v382, %v384
        %s387 = sld [smem:[#allocation2]]
        %v388 = vstv %s387
        %v389 = vmul.f32 %v388, %v386
        %v390 = vadd.f32 %v277, %v389
        %s391 = sld [smem:[#allocation2 + $0x80]]
        %v392 = vstv %s391
        %v393 = vmul.f32 %v392, %v386
        %v394 = vadd.f32 %v280, %v393
        %v395 = vld [vmem:[%s1] sm:$0xff]
        %v396 = vld [vmem:[%s1 + $0x8] sm:$0xf]
        %397 = vmatpush.msra.mxu0 0.0
        %398 = vmatpush.msra.mxu0 0.0
        %399 = vmatpush.msra.mxu0 0.0
        %400 = vmatpush.msra.mxu0 0.0
        %401 = vmatpush.msra.mxu0 0.0
        %402 = vmatpush.msra.mxu0 0.0
        %403 = vmatpush.msra.mxu0 0.0
        %404 = vmatpush.msra.mxu0 0.0
        %405 = vmatpush.msra.mxu0 0.0
        %406 = vmatpush.msra.mxu0 0.0
        %407 = vmatpush.msra.mxu0 0.0
        %408 = vmatpush.msra.mxu0 0.0
        %409 = vmatpush.msra.mxu0 0.0
        %410 = vmatpush.msra.mxu0 0.0
        %411 = vmatpush.msra.mxu0 0.0
        %412 = vmatpush.msra.mxu0 %v286
        %413 = vmatmul.f32.gmra.mxu0 %v321
        %v414 = vpop.f32.mrf.mxu0
        %v415 = vadd.f32 0.0, %v414
        %416 = vmatmul.f32.gmra.mxu0 %v324
        %v417 = vpop.f32.mrf.mxu0
        %v418 = vadd.f32 0.0, %v417
        %419 = vdwg.mxu0
        %v421 = vsel %vm290, %v395, 0
        %v424 = vsel %vm290, %v396, 0
        %426 = vmatpush.msra.mxu0 0.0
        %427 = vmatpush.msra.mxu0 0.0
        %428 = vmatpush.msra.mxu0 0.0
        %429 = vmatpush.msra.mxu0 0.0
        %430 = vmatpush.msra.mxu0 0.0
        %431 = vmatpush.msra.mxu0 0.0
        %432 = vmatpush.msra.mxu0 0.0
        %433 = vmatpush.msra.mxu0 0.0
        %434 = vmatpush.msra.mxu0 0.0
        %435 = vmatpush.msra.mxu0 0.0
        %436 = vmatpush.msra.mxu0 0.0
        %437 = vmatpush.msra.mxu0 0.0
        %438 = vmatpush.msra.mxu0 0.0
        %439 = vmatpush.msra.mxu0 0.0
        %440 = vmatpush.msra.mxu0 0.0
        %441 = vmatpush.msra.mxu0 %v281
        %442 = vmatmul.f32.gmra.mxu0 %v421
        %v443 = vpop.f32.mrf.mxu0
        %v444 = vadd.f32 %v415, %v443
        %445 = vmatmul.f32.gmra.mxu0 %v424
        %v446 = vpop.f32.mrf.mxu0
        %v447 = vadd.f32 %v418, %v446
        %448 = vdwg.mxu0
        %s449 = scalar_lea.vmem %s274, 16
        %v450 = vld [vmem:[%s449] sm:$0xff]
        %451 = vmatpush.msra.mxu0 0.0
        %452 = vmatpush.msra.mxu0 0.0
        %453 = vmatpush.msra.mxu0 0.0
        %454 = vmatpush.msra.mxu0 0.0
        %455 = vmatpush.msra.mxu0 0.0
        %456 = vmatpush.msra.mxu0 0.0
        %457 = vmatpush.msra.mxu0 0.0
        %458 = vmatpush.msra.mxu0 0.0
        %459 = vmatpush.msra.mxu0 0.0
        %460 = vmatpush.msra.mxu0 0.0
        %461 = vmatpush.msra.mxu0 0.0
        %462 = vmatpush.msra.mxu0 0.0
        %463 = vmatpush.msra.mxu0 0.0
        %464 = vmatpush.msra.mxu0 0.0
        %465 = vmatpush.msra.mxu0 0.0
        %466 = vmatpush.msra.mxu0 %v450
        %467 = vmatmul.f32.gmra.mxu0 %v292
        %v468 = vpop.f32.mrf.mxu0
        %v469 = vadd.f32 0.0, %v468
        %470 = vmatmul.f32.gmra.mxu0 %v295
        %v471 = vpop.f32.mrf.mxu0
        %v472 = vadd.f32 0.0, %v471
        %473 = vdwg.mxu0
        %v474 = vadd.f32 %v444, %v469
        %v475 = vadd.f32 %v447, %v472
        %v476 = vadd.f32 %v474, %v354
        %v477 = vadd.f32 %v475, %v359
        %v478 = vsub.f32 0.0, %v476
        %v479 = vmul.f32 %v478, 1.442695
        %v480 = vpow.pop %v479
        %v481 = vadd.f32 %v480, 1.0
        %v482 = vrcp.pop %v481
        %v483 = vmul.f32 %v481, %v482
        %v484 = vsub.f32 1.0, %v483
        %v485 = vmul.f32 %v482, %v484
        %v486 = vadd.f32 %v482, %v485
        %vm487 = vweird.f32 %v481
        %vm488 = vweird.f32 %v482
        %vm489 = vmor %vm487, %vm488
        %v490 = vsel %vm489, %v482, %v486
        %v491 = vand.u32 2147483647, %v481
        %vm492 = vcmp.eq.f32.partialorder %v491, 8.507059e+37
        %v493 = vand.u32 %v481, 2147483648
        %v494 = vor.u32 1.1754944e-38, %v493
        %v495 = vsel %vm492, %v494, %v490
        %v496 = vmul.f32 1.0, %v495
        %v497 = vadd.f32 %v476, %v477
        %v499 = vrot.slane %v496, 4
        %v501 = vmul.f32 %v497, %v499
        %s502 = sld [smem:[#allocation2 + $0x1]]
        %v503 = vstv %s502
        %v504 = vmul.f32 %v503, %v501
        %v505 = vadd.f32 %v390, %v504
        %s506 = sld [smem:[#allocation2 + $0x81]]
        %v507 = vstv %s506
        %v508 = vmul.f32 %v507, %v501
        %v509 = vadd.f32 %v394, %v508
        %510 = vmatpush.msra.mxu0 0.0
        %511 = vmatpush.msra.mxu0 0.0
        %512 = vmatpush.msra.mxu0 0.0
        %513 = vmatpush.msra.mxu0 0.0
        %514 = vmatpush.msra.mxu0 0.0
        %515 = vmatpush.msra.mxu0 0.0
        %516 = vmatpush.msra.mxu0 0.0
        %517 = vmatpush.msra.mxu0 0.0
        %518 = vmatpush.msra.mxu0 0.0
        %519 = vmatpush.msra.mxu0 0.0
        %520 = vmatpush.msra.mxu0 0.0
        %521 = vmatpush.msra.mxu0 0.0
        %522 = vmatpush.msra.mxu0 0.0
        %523 = vmatpush.msra.mxu0 0.0
        %524 = vmatpush.msra.mxu0 0.0
        %525 = vmatpush.msra.mxu0 %v450
        %526 = vmatmul.f32.gmra.mxu0 %v321
        %v527 = vpop.f32.mrf.mxu0
        %v528 = vadd.f32 0.0, %v527
        %529 = vmatmul.f32.gmra.mxu0 %v324
        %v530 = vpop.f32.mrf.mxu0
        %v531 = vadd.f32 0.0, %v530
        %532 = vdwg.mxu0
        %533 = vmatpush.msra.mxu0 0.0
        %534 = vmatpush.msra.mxu0 0.0
        %535 = vmatpush.msra.mxu0 0.0
        %536 = vmatpush.msra.mxu0 0.0
        %537 = vmatpush.msra.mxu0 0.0
        %538 = vmatpush.msra.mxu0 0.0
        %539 = vmatpush.msra.mxu0 0.0
        %540 = vmatpush.msra.mxu0 0.0
        %541 = vmatpush.msra.mxu0 0.0
        %542 = vmatpush.msra.mxu0 0.0
        %543 = vmatpush.msra.mxu0 0.0
        %544 = vmatpush.msra.mxu0 0.0
        %545 = vmatpush.msra.mxu0 0.0
        %546 = vmatpush.msra.mxu0 0.0
        %547 = vmatpush.msra.mxu0 0.0
        %548 = vmatpush.msra.mxu0 %v286
        %549 = vmatmul.f32.gmra.mxu0 %v421
        %v550 = vpop.f32.mrf.mxu0
        %v551 = vadd.f32 %v528, %v550
        %552 = vmatmul.f32.gmra.mxu0 %v424
        %v553 = vpop.f32.mrf.mxu0
        %v554 = vadd.f32 %v531, %v553
        %555 = vdwg.mxu0
        %s556 = scalar_lea.vmem %s274, 24
        %v557 = vld [vmem:[%s556] sm:$0xff]
        %558 = vmatpush.msra.mxu0 0.0
        %559 = vmatpush.msra.mxu0 0.0
        %560 = vmatpush.msra.mxu0 0.0
        %561 = vmatpush.msra.mxu0 0.0
        %562 = vmatpush.msra.mxu0 0.0
        %563 = vmatpush.msra.mxu0 0.0
        %564 = vmatpush.msra.mxu0 0.0
        %565 = vmatpush.msra.mxu0 0.0
        %566 = vmatpush.msra.mxu0 0.0
        %567 = vmatpush.msra.mxu0 0.0
        %568 = vmatpush.msra.mxu0 0.0
        %569 = vmatpush.msra.mxu0 0.0
        %570 = vmatpush.msra.mxu0 0.0
        %571 = vmatpush.msra.mxu0 0.0
        %572 = vmatpush.msra.mxu0 0.0
        %573 = vmatpush.msra.mxu0 %v557
        %574 = vmatmul.f32.gmra.mxu0 %v292
        %v575 = vpop.f32.mrf.mxu0
        %v576 = vadd.f32 0.0, %v575
        %577 = vmatmul.f32.gmra.mxu0 %v295
        %v578 = vpop.f32.mrf.mxu0
        %v579 = vadd.f32 0.0, %v578
        %580 = vdwg.mxu0
        %v581 = vadd.f32 %v551, %v576
        %v582 = vadd.f32 %v554, %v579
        %v583 = vadd.f32 %v581, %v354
        %v584 = vadd.f32 %v582, %v359
        %v585 = vsub.f32 0.0, %v583
        %v586 = vmul.f32 %v585, 1.442695
        %v587 = vpow.pop %v586
        %v588 = vadd.f32 %v587, 1.0
        %v589 = vrcp.pop %v588
        %v590 = vmul.f32 %v588, %v589
        %v591 = vsub.f32 1.0, %v590
        %v592 = vmul.f32 %v589, %v591
        %v593 = vadd.f32 %v589, %v592
        %vm594 = vweird.f32 %v588
        %vm595 = vweird.f32 %v589
        %vm596 = vmor %vm594, %vm595
        %v597 = vsel %vm596, %v589, %v593
        %v598 = vand.u32 2147483647, %v588
        %vm599 = vcmp.eq.f32.partialorder %v598, 8.507059e+37
        %v600 = vand.u32 %v588, 2147483648
        %v601 = vor.u32 1.1754944e-38, %v600
        %v602 = vsel %vm599, %v601, %v597
        %v603 = vmul.f32 1.0, %v602
        %v604 = vadd.f32 %v583, %v584
        %v606 = vrot.slane %v603, 4
        %v608 = vmul.f32 %v604, %v606
        %s609 = sld [smem:[#allocation2 + $0x2]]
        %v610 = vstv %s609
        %v611 = vmul.f32 %v610, %v608
        %v612 = vadd.f32 %v505, %v611
        %s613 = sld [smem:[#allocation2 + $0x82]]
        %v614 = vstv %s613
        %v615 = vmul.f32 %v614, %v608
        %v616 = vadd.f32 %v509, %v615
        %617 = vmatpush.msra.mxu0 0.0
        %618 = vmatpush.msra.mxu0 0.0
        %619 = vmatpush.msra.mxu0 0.0
        %620 = vmatpush.msra.mxu0 0.0
        %621 = vmatpush.msra.mxu0 0.0
        %622 = vmatpush.msra.mxu0 0.0
        %623 = vmatpush.msra.mxu0 0.0
        %624 = vmatpush.msra.mxu0 0.0
        %625 = vmatpush.msra.mxu0 0.0
        %626 = vmatpush.msra.mxu0 0.0
        %627 = vmatpush.msra.mxu0 0.0
        %628 = vmatpush.msra.mxu0 0.0
        %629 = vmatpush.msra.mxu0 0.0
        %630 = vmatpush.msra.mxu0 0.0
        %631 = vmatpush.msra.mxu0 0.0
        %632 = vmatpush.msra.mxu0 %v557
        %633 = vmatmul.f32.gmra.mxu0 %v321
        %v634 = vpop.f32.mrf.mxu0
        %v635 = vadd.f32 0.0, %v634
        %636 = vmatmul.f32.gmra.mxu0 %v324
        %v637 = vpop.f32.mrf.mxu0
        %v638 = vadd.f32 0.0, %v637
        %639 = vdwg.mxu0
        %640 = vmatpush.msra.mxu0 0.0
        %641 = vmatpush.msra.mxu0 0.0
        %642 = vmatpush.msra.mxu0 0.0
        %643 = vmatpush.msra.mxu0 0.0
        %644 = vmatpush.msra.mxu0 0.0
        %645 = vmatpush.msra.mxu0 0.0
        %646 = vmatpush.msra.mxu0 0.0
        %647 = vmatpush.msra.mxu0 0.0
        %648 = vmatpush.msra.mxu0 0.0
        %649 = vmatpush.msra.mxu0 0.0
        %650 = vmatpush.msra.mxu0 0.0
        %651 = vmatpush.msra.mxu0 0.0
        %652 = vmatpush.msra.mxu0 0.0
        %653 = vmatpush.msra.mxu0 0.0
        %654 = vmatpush.msra.mxu0 0.0
        %655 = vmatpush.msra.mxu0 %v450
        %656 = vmatmul.f32.gmra.mxu0 %v421
        %v657 = vpop.f32.mrf.mxu0
        %v658 = vadd.f32 %v635, %v657
        %659 = vmatmul.f32.gmra.mxu0 %v424
        %v660 = vpop.f32.mrf.mxu0
        %v661 = vadd.f32 %v638, %v660
        %662 = vdwg.mxu0
        %v663 = vadd.f32 %v658, %v354
        %v664 = vadd.f32 %v661, %v359
        %v665 = vsub.f32 0.0, %v663
        %v666 = vmul.f32 %v665, 1.442695
        %v667 = vpow.pop %v666
        %v668 = vadd.f32 %v667, 1.0
        %v669 = vrcp.pop %v668
        %v670 = vmul.f32 %v668, %v669
        %v671 = vsub.f32 1.0, %v670
        %v672 = vmul.f32 %v669, %v671
        %v673 = vadd.f32 %v669, %v672
        %vm674 = vweird.f32 %v668
        %vm675 = vweird.f32 %v669
        %vm676 = vmor %vm674, %vm675
        %v677 = vsel %vm676, %v669, %v673
        %v678 = vand.u32 2147483647, %v668
        %vm679 = vcmp.eq.f32.partialorder %v678, 8.507059e+37
        %v680 = vand.u32 %v668, 2147483648
        %v681 = vor.u32 1.1754944e-38, %v680
        %v682 = vsel %vm679, %v681, %v677
        %v683 = vmul.f32 1.0, %v682
        %v684 = vadd.f32 %v663, %v664
        %v686 = vrot.slane %v683, 4
        %v688 = vmul.f32 %v684, %v686
        %s689 = sld [smem:[#allocation2 + $0x3]]
        %v690 = vstv %s689
        %v691 = vmul.f32 %v690, %v688
        %v692 = vadd.f32 %v612, %v691
        %s693 = sld [smem:[#allocation2 + $0x83]]
        %v694 = vstv %s693
        %v695 = vmul.f32 %v694, %v688
        %v696 = vadd.f32 %v616, %v695
        %697 = vst [vmem:[%s266] sm:$0xf] %v692
        %s698 = scalar_lea.vmem %s266, 4 [#allocation7]
        %699 = vst [vmem:[%s698] sm:$0xf] %v696
        %s700 = sand.u32 %s155, 1
        %s701 = scalar_lea.sflag [#allocation3], %s700
        %s702 = sand.u32 %s155, 1
        %s703 = smul.addr %s702, 8
        %s704 = scalar_lea.vmem [#allocation7], %s703
        // Predicated region
        $region49: #{tpu_custom_call.1} parent=39 // pred_check
          %p705 = pneg %p165
        $region50: #{tpu_custom_call.1} parent=39 // pred_check_branch
          %707 = sbr.rel (%p705) target = $region52
        $region51: #{tpu_custom_call.1} parent=39 // pred_region
          %709 = vsyncadd %s701, 0
          %s710 = smul.addr %s25, 2
          %s711 = sadd.s32 %s26, %s710
          %s712 = smul.addr %s711, 4
          %s713 = scalar_lea.hbm %s5, %s712
          %s714 = sshll.u32 %s704, 4
          %s715 = int_to_ptr.vmem [resolvable:$true] %s714
          %s716 = sshll.u32 %s713, 4
          %s717 = int_to_ptr.hbm [resolvable:$true] %s716
          %722 = dma.vmem_to_hbm [thread:$0]  %s715, 128, %s717, %s701, 64, 64, 4
        $region52: #{tpu_custom_call.1} parent=39 // pred_fallthru
          _
      $region40: #{tpu_custom_call.1} parent=5 // pred_fallthru
        _
      %p723 = scmp.le.s32.totalorder 2, %s16
      // Predicated region
      $region53: #{tpu_custom_call.1} parent=5 // pred_check
        %p724 = pneg %p723
      $region54: #{tpu_custom_call.1} parent=5 // pred_check_branch
        %726 = sbr.rel (%p724) target = $region56
      $region55: #{tpu_custom_call.1} parent=5 // pred_region
        %s727 = ssub.s32 %s16, 2
        // Predicated region
        $region57: #{tpu_custom_call.1} parent=55 // pred_check
          %p728 = pneg %p171
        $region58: #{tpu_custom_call.1} parent=55 // pred_check_branch
          %730 = sbr.rel (%p728) target = $region60
        $region59: #{tpu_custom_call.1} parent=55 // pred_region
          %s731 = sand.u32 %s156, 1
          %s732 = scalar_lea.sflag [#allocation3], %s731
          %s733 = sand.u32 %s156, 1
          %s734 = smul.addr %s733, 8
          %s735 = scalar_lea.vmem [#allocation7], %s734
          %737 = dma.done %s732, 128
        $region60: #{tpu_custom_call.1} parent=55 // pred_fallthru
          _
      $region56: #{tpu_custom_call.1} parent=5 // pred_fallthru
        _
    $region6: #{tpu_custom_call.1} parent=1 // loop_footer
      %s20 = sadd.s32 1, %s16
    $region7: #{tpu_custom_call.1} parent=1 // loop_footer_branch
      %15 = sbr.rel target = $region3
    $region8: #{tpu_custom_call.1} parent=1 // loop_exit
      _
    %738 = vsyncpa [#allocation3], 1
    %s739 = scalar_lea.sflag [#allocation3], 1
    %740 = vsyncpa %s739, 1
    %741 = vsyncpa [#allocation4], 1
    %s742 = scalar_lea.sflag [#allocation4], 1
    %743 = vsyncpa %s742, 1
    %744 = vsyncpa [#allocation6], 1

</llo_original>
